<compile_context>
chip_gen: v7x
topology: tpu7x:2x2x1
jax: 0.10.0
libtpu: 0.0.40
codegen_flags: <defaults>
</compile_context>

<pallas_src>
import functools

import jax
import jax.numpy as jnp
from jax import lax
from jax.experimental import pallas as pl
from jax.experimental.pallas import tpu as pltpu

EPS = 1e-5  # nn.LayerNorm default


def _round_up(n: int, m: int) -> int:
    return ((n + m - 1) // m) * m


def _vmem_cap_bytes() -> int:
    """Safe scoped-VMEM ceiling: ~65% of physical (v7x: ~41 MiB, v5e/v6e: ~83 MiB)."""
    try:
        phys = int(pltpu.get_tpu_info().vmem_capacity_bytes)
    except Exception:
        phys = 64 * 1024 * 1024  # assume v7x (smallest) if query unavailable
    return min(int(phys * 0.65), 100 * 1024 * 1024)


# --------------------------------------------------------------------------
# Kernels
# --------------------------------------------------------------------------
def _layernorm_f32(x, inv_d):
    # One read of x: var = E[x^2] - mean^2 (fewer live f32 temporaries).
    s1 = jnp.sum(x, axis=-1, keepdims=True)
    s2 = jnp.sum(x * x, axis=-1, keepdims=True)
    mean = s1 * inv_d
    var = jnp.maximum(s2 * inv_d - mean * mean, 0.0)
    return (x - mean) * lax.rsqrt(var + EPS)


def prenorm_fused_kernel(x_ref, w_ref, b_ref, o_ref, *, inv_d):
    """1-D grid over row tiles; full folded (D, H) weight resident in VMEM."""
    x = x_ref[...].astype(jnp.float32)
    xn = _layernorm_f32(x, inv_d)
    out = jnp.dot(xn.astype(w_ref.dtype), w_ref[...],
                  preferred_element_type=jnp.float32)
    o_ref[...] = (out + b_ref[...].astype(jnp.float32)).astype(o_ref.dtype)


def prenorm_split_kernel(x_ref, w_ref, b_ref, o_ref, xn_ref, *, inv_d):
    """2-D grid (rows, features). LayerNorm runs once per row tile (j == 0)
    and the normalized tile is cached in VMEM scratch for the other j steps."""
    @pl.when(pl.program_id(1) == 0)
    def _():
        x = x_ref[...].astype(jnp.float32)
        xn_ref[...] = _layernorm_f32(x, inv_d).astype(xn_ref.dtype)

    out = jnp.dot(xn_ref[...], w_ref[...], preferred_element_type=jnp.float32)
    o_ref[...] = (out + b_ref[...].astype(jnp.float32)).astype(o_ref.dtype)


# --------------------------------------------------------------------------
# Parameter folding (hoisted off the per-forward hot path)
# --------------------------------------------------------------------------
def fold_prenorm_params(gamma, beta, w, b, mxu_dtype=None):
    """Fold the LayerNorm affine into the Linear layer (do this ONCE per
    parameter set):  (xn*g + beta) @ W + b == xn @ (g[:,None]*W) + (beta@W + b).
    `mxu_dtype=jnp.bfloat16` optionally down-casts the folded weight for
    faster MXU feed (slightly different numerics vs. f32)."""
    out_dtype = mxu_dtype if mxu_dtype is not None else w.dtype
    w_f = w.astype(jnp.float32)
    w_fold = (gamma.astype(jnp.float32)[:, None] * w_f).astype(out_dtype)
    b_fold = beta.astype(jnp.float32) @ w_f + b.astype(jnp.float32)
    return w_fold, b_fold


# --------------------------------------------------------------------------
# Wrapper
# --------------------------------------------------------------------------
def _choose_row_tile(rows, row_align, tm_max):
    """Pick (tm, rows_padded). Prefer tiles that divide `rows` exactly so the
    wrapper never pads x or slices the output (the kernel is HBM-bound)."""
    if rows <= tm_max:
        tm = rows  # block == full array dim is always legal
        # Give v7x's two TensorCores something to split when it costs nothing.
        if rows % (2 * row_align) == 0 and rows // 2 >= row_align:
            tm = rows // 2
        return tm, rows
    # Largest multiple of row_align that divides rows exactly.
    t = (tm_max // row_align) * row_align
    while t >= row_align and rows % t != 0:
        t -= row_align
    if t >= row_align and rows % t == 0 and t >= 128:
        return t, rows
    # Fall back to padding with a large aligned tile.
    tm = _round_up(min(tm_max, _round_up(rows, row_align)), row_align)
    return tm, _round_up(rows, tm)


def prenorm_folded(x, w_fold, b_fold, *, tm=512):
    """x: (B, S, dim) -> (B, S, hidden) = Linear(LayerNorm(x)), with the
    LayerNorm affine already folded into (w_fold, b_fold)."""
    B, S, D = x.shape
    H = w_fold.shape[1]
    rows = B * S
    out_dtype = x.dtype
    out_isize = jnp.dtype(out_dtype).itemsize

    row_align = 16 if x.dtype == jnp.bfloat16 else 8
    tm_eff, rows_p = _choose_row_tile(rows, row_align, tm)

    x2 = x.reshape(rows, D)
    if rows_p != rows:  # rare: only when no aligned divisor of rows exists
        x2 = jnp.pad(x2, ((0, rows_p - rows), (0, 0)))

    b2 = b_fold.reshape(1, H)
    w_bytes = D * H * w_fold.dtype.itemsize
    cap = _vmem_cap_bytes()

    if w_bytes <= 8 * 1024 * 1024:
        # ---- Fast path: feature axis collapsed, weight resident in VMEM,
        #      LayerNorm computed exactly once per row.
        est = (2 * w_bytes                                   # resident weight
               + 2 * tm_eff * D * x2.dtype.itemsize          # x double-buffer
               + 2 * tm_eff * H * out_isize                  # out double-buffer
               + 2 * H * 4                                   # bias
               + (2 * tm_eff * D + tm_eff * H) * 4)          # f32 temporaries
        vmem_limit = int(min(max(est + 8 * 1024 * 1024, 32 * 1024 * 1024), cap))

        kernel = functools.partial(prenorm_fused_kernel, inv_d=1.0 / D)
        out2 = pl.pallas_call(
            kernel,
            out_shape=jax.ShapeDtypeStruct((rows_p, H), out_dtype),
            grid_spec=pltpu.PrefetchScalarGridSpec(
                num_scalar_prefetch=0,
                grid=(rows_p // tm_eff,),
                in_specs=[
                    pl.BlockSpec((tm_eff, D), lambda i: (i, 0)),  # x row tile
                    pl.BlockSpec((D, H), lambda i: (0, 0)),       # weight: DMA once
                    pl.BlockSpec((1, H), lambda i: (0, 0)),       # bias:   DMA once
                ],
                out_specs=pl.BlockSpec((tm_eff, H), lambda i: (i, 0)),
            ),
            compiler_params=pltpu.CompilerParams(
                dimension_semantics=("parallel",),
                vmem_limit_bytes=vmem_limit),
        )(x2, w_fold, b2)
        if rows_p != rows:
            out2 = out2[:rows]
        return out2.reshape(B, S, H)

    # ---- Fallback: weight too large to keep resident. Tile the feature axis,
    #      cache xn in VMEM scratch so LayerNorm runs once per row tile.
    Hp = _round_up(H, 128)
    w_p, b_p = w_fold, b2
    if Hp != H:
        w_p = jnp.pad(w_fold, ((0, 0), (0, Hp - H)))
        b_p = jnp.pad(b2, ((0, 0), (0, Hp - H)))
    tn_eff = Hp
    for cand in (512, 256, 128):
        if Hp % cand == 0:
            tn_eff = cand
            break

    est = (2 * tm_eff * D * x2.dtype.itemsize
           + 2 * D * tn_eff * w_p.dtype.itemsize
           + 2 * tm_eff * tn_eff * out_isize
           + 2 * tn_eff * 4
           + tm_eff * D * w_p.dtype.itemsize                 # xn scratch
           + (2 * tm_eff * D + tm_eff * tn_eff) * 4)         # f32 temporaries
    vmem_limit = int(min(max(est + 8 * 1024 * 1024, 32 * 1024 * 1024), cap))

    kernel = functools.partial(prenorm_split_kernel, inv_d=1.0 / D)
    out2 = pl.pallas_call(
        kernel,
        out_shape=jax.ShapeDtypeStruct((rows_p, Hp), out_dtype),
        grid_spec=pltpu.PrefetchScalarGridSpec(
            num_scalar_prefetch=0,
            grid=(rows_p // tm_eff, Hp // tn_eff),
            in_specs=[
                pl.BlockSpec((tm_eff, D), lambda i, j: (i, 0)),
                pl.BlockSpec((D, tn_eff), lambda i, j: (0, j)),
                pl.BlockSpec((1, tn_eff), lambda i, j: (0, j)),
            ],
            out_specs=pl.BlockSpec((tm_eff, tn_eff), lambda i, j: (i, j)),
            scratch_shapes=[pltpu.VMEM((tm_eff, D), w_p.dtype)],
        ),
        compiler_params=pltpu.CompilerParams(
            dimension_semantics=("parallel", "arbitrary"),
            vmem_limit_bytes=vmem_limit),
    )(x2, w_p, b_p)
    return out2[:rows, :H].reshape(B, S, H)


def prenorm(x, gamma, beta, w, b, *, tm=512, mxu_dtype=None):
    """Convenience wrapper: folds params and runs the fused kernel.
    Prefer fold_prenorm_params(...) once + prenorm_folded(...) per forward."""
    w_fold, b_fold = fold_prenorm_params(gamma, beta, w, b, mxu_dtype=mxu_dtype)
    return prenorm_folded(x, w_fold, b_fold, tm=tm)


# --------------------------------------------------------------------------
# Pure-JAX reference (LayerNorm -> Linear)
# --------------------------------------------------------------------------
def prenorm_reference(x, gamma, beta, w, b):
    xf = x.astype(jnp.float32)
    mean = jnp.mean(xf, axis=-1, keepdims=True)
    var = jnp.mean((xf - mean) ** 2, axis=-1, keepdims=True)
    xn = (xf - mean) * lax.rsqrt(var + EPS)
    y = xn * gamma.astype(jnp.float32) + beta.astype(jnp.float32)
    return (y @ w.astype(jnp.float32) + b.astype(jnp.float32)).astype(x.dtype)


if __name__ == "__main__":
    B, S, D, H = 2, 8, 32, 32

    key = jax.random.PRNGKey(0)
    kx, kw, kb, kg, kbe = jax.random.split(key, 5)

    x = jax.random.normal(kx, (B, S, D), dtype=jnp.float32)

    # LayerNorm params (perturbed from torch default init so the affine fold
    # is actually exercised).
    gamma = 1.0 + 0.1 * jax.random.normal(kg, (D,), dtype=jnp.float32)
    beta = 0.1 * jax.random.normal(kbe, (D,), dtype=jnp.float32)

    # fn = Linear(D, H)
    w = jax.random.normal(kw, (D, H), dtype=jnp.float32) * 0.02
    b = jax.random.normal(kb, (H,), dtype=jnp.float32) * 0.02

    # Fold once (off the per-forward hot path), then run the kernel.
    w_fold, b_fold = fold_prenorm_params(gamma, beta, w, b)
    out = prenorm_folded(x, w_fold, b_fold)
    out = jax.block_until_ready(out)

    ref = prenorm_reference(x, gamma, beta, w, b)
    assert out.shape == (B, S, H)
    assert jnp.allclose(out, ref, atol=1e-4, rtol=1e-4), "mismatch vs reference"

    print("KERNEL_OK")
</pallas_src>

<mosaic_0001>
module attributes {stable_mosaic.version = 11 : i64} {
  func.func @prenorm_fused_kernel(%arg0: i32, %arg1: memref<8x32xf32, #tpu.memory_space<vmem>>, %arg2: memref<32x32xf32, #tpu.memory_space<vmem>>, %arg3: memref<1x32xf32, #tpu.memory_space<vmem>>, %arg4: memref<8x32xf32, #tpu.memory_space<vmem>>) attributes {dimension_semantics = [#tpu.dimension_semantics<parallel>], iteration_bounds = array<i64: 2>, scalar_prefetch = 0 : i64, scratch_operands = 0 : i64, tpu.core_type = #tpu.core_type<tc>, window_params = [{transform_indices = @transform_0, window_bounds = array<i64: 8, 32>}, {pipeline_mode = #tpu.pipeline_mode<synchronous>, transform_indices = @transform_1, window_bounds = array<i64: 32, 32>}, {pipeline_mode = #tpu.pipeline_mode<synchronous>, transform_indices = @transform_2, window_bounds = array<i64: 1, 32>}, {transform_indices = @transform_3, window_bounds = array<i64: 8, 32>}]} {
    %c0 = arith.constant 0 : index
    %c0_0 = arith.constant 0 : index
    %0 = vector.load %arg1[%c0, %c0_0] : memref<8x32xf32, #tpu.memory_space<vmem>>, vector<8x32xf32>
    %cst = arith.constant dense<0.000000e+00> : vector<8xf32>
    %1 = vector.multi_reduction <add>, %0, %cst [1] : vector<8x32xf32> to vector<8xf32>
    %2 = vector.shape_cast %1 : vector<8xf32> to vector<8x1xf32>
    %3 = arith.mulf %0, %0 : vector<8x32xf32>
    %cst_1 = arith.constant dense<0.000000e+00> : vector<8xf32>
    %4 = vector.multi_reduction <add>, %3, %cst_1 [1] : vector<8x32xf32> to vector<8xf32>
    %5 = vector.shape_cast %4 : vector<8xf32> to vector<8x1xf32>
    %cst_2 = arith.constant 3.125000e-02 : f32
    %6 = vector.broadcast %cst_2 : f32 to vector<8x1xf32>
    %7 = arith.mulf %2, %6 : vector<8x1xf32>
    %cst_3 = arith.constant 3.125000e-02 : f32
    %8 = vector.broadcast %cst_3 : f32 to vector<8x1xf32>
    %9 = arith.mulf %5, %8 : vector<8x1xf32>
    %10 = arith.mulf %7, %7 : vector<8x1xf32>
    %11 = arith.subf %9, %10 : vector<8x1xf32>
    %cst_4 = arith.constant 0.000000e+00 : f32
    %12 = vector.broadcast %cst_4 : f32 to vector<8x1xf32>
    %13 = arith.maximumf %11, %12 : vector<8x1xf32>
    %14 = vector.broadcast %7 : vector<8x1xf32> to vector<8x32xf32>
    %15 = arith.subf %0, %14 : vector<8x32xf32>
    %cst_5 = arith.constant 9.99999974E-6 : f32
    %16 = vector.broadcast %cst_5 : f32 to vector<8x1xf32>
    %17 = arith.addf %13, %16 : vector<8x1xf32>
    %18 = math.rsqrt %17 : vector<8x1xf32>
    %19 = vector.broadcast %18 : vector<8x1xf32> to vector<8x32xf32>
    %20 = arith.mulf %15, %19 : vector<8x32xf32>
    %c0_6 = arith.constant 0 : index
    %c0_7 = arith.constant 0 : index
    %21 = vector.load %arg2[%c0_6, %c0_7] : memref<32x32xf32, #tpu.memory_space<vmem>>, vector<32x32xf32>
    %cst_8 = arith.constant dense<0.000000e+00> : vector<8x32xf32>
    %22 = tpu.matmul %20, %21, %cst_8 {dimension_numbers = #tpu.dot_dimension_numbers<[1], [0], [0], [1], [0, 0, 1, 1], [], []>} : vector<8x32xf32>, vector<32x32xf32>, vector<8x32xf32> -> vector<8x32xf32>
    %c0_9 = arith.constant 0 : index
    %c0_10 = arith.constant 0 : index
    %23 = vector.load %arg3[%c0_9, %c0_10] : memref<1x32xf32, #tpu.memory_space<vmem>>, vector<1x32xf32>
    %24 = vector.broadcast %23 : vector<1x32xf32> to vector<8x32xf32>
    %25 = arith.addf %22, %24 : vector<8x32xf32>
    %c0_11 = arith.constant 0 : index
    %c0_12 = arith.constant 0 : index
    %26 = vector.load %arg4[%c0_11, %c0_12] : memref<8x32xf32, #tpu.memory_space<vmem>>, vector<8x32xf32>
    tpu.vector_store %arg4[%c0_11, %c0_12], %25 {strides = array<i32>} : memref<8x32xf32, #tpu.memory_space<vmem>>, vector<8x32xf32>,
    return
  }
  func.func @transform_0(%arg0: i32) -> (i32, i32) {
    %c0_i32 = arith.constant 0 : i32
    %c0_i32_0 = arith.constant 0 : i32
    return %arg0, %c0_i32 : i32, i32
  }
  func.func @transform_1(%arg0: i32) -> (i32, i32) {
    %c0_i32 = arith.constant 0 : i32
    %c0_i32_0 = arith.constant 0 : i32
    %c0_i32_1 = arith.constant 0 : i32
    return %c0_i32, %c0_i32_0 : i32, i32
  }
  func.func @transform_2(%arg0: i32) -> (i32, i32) {
    %c0_i32 = arith.constant 0 : i32
    %c0_i32_0 = arith.constant 0 : i32
    %c0_i32_1 = arith.constant 0 : i32
    return %c0_i32, %c0_i32_0 : i32, i32
  }
  func.func @transform_3(%arg0: i32) -> (i32, i32) {
    %c0_i32 = arith.constant 0 : i32
    %c0_i32_0 = arith.constant 0 : i32
    return %arg0, %c0_i32 : i32, i32
  }
}

</mosaic_0001>

<llo_original>
// kernel: tpu_custom_call.1
$region0: #{tpu_custom_call.1}
  #allocation0 [shape = 'u32[]', space=smem, size = 0x4, offset = 0x4, fixed_abs, tag = 'smem constant byte address 0x4 - core index']
  #allocation1 [shape = 'u32[144,128]{1,0:T(1,128)}', space=vmem, size = 0x12000, scoped, tag = 'internal scratch']
  %s0 = inlined_call_operand.hbm [shape: f32[16,32], index: 0, kind: input, shape index: {}]
  %s1 = inlined_call_operand.hbm [shape: f32[32,32], index: 1, kind: input, shape index: {}]
  %s2 = inlined_call_operand.vmem [shape: f32[1,32], index: 2, kind: input, shape index: {}]
  %s3 = inlined_call_operand.hbm [shape: f32[16,32], index: 3, kind: output, shape index: {}]
  %s4 = sld [smem:[#allocation0]]
  $region53: #{tpu_custom_call.1} parent=0
    _
  %s6 = ssub.s32 1, %s4
  %s7 = scalar_select 0, %s6, %s4
  $region1: #{tpu_custom_call.1} parent=0
    #allocation2 [shape = 'u8[8192]{0}', space=vmem, size = 0x2000, scoped, tag = 'input window, operand 0']
    #allocation3 [shape = 's32[2]{0}', space=sflag, size = 0x8, scoped, tag = 'scoped memory for tpu_custom_call.1']
    #allocation4 [shape = 's32[2]{0}', space=sflag, size = 0x8, scoped, tag = 'scoped memory for tpu_custom_call.1']
    #allocation5 [shape = 'u8[16384]{0}', space=vmem, size = 0x4000, scoped, tag = 'input window, operand 1, single buffered']
    #allocation6 [shape = 's32[1]{0}', space=sflag, size = 0x4, scoped, tag = 'scoped memory for tpu_custom_call.1']
    #allocation7 [shape = 'u8[8192]{0}', space=vmem, size = 0x2000, scoped, tag = 'output window, operand 0']
    %8 = vsyncpa [#allocation3], 0
    %s9 = scalar_lea.sflag [#allocation3], 1
    %10 = vsyncpa %s9, 0
    %11 = vsyncpa [#allocation6], 0
    %12 = vsyncpa [#allocation4], 0
    %s13 = scalar_lea.sflag [#allocation4], 1
    %14 = vsyncpa %s13, 0
    loop: start=0, step=1, limit=4
    $region2: #{tpu_custom_call.1} parent=1 // loop_pre_header
      _
    $region3: #{tpu_custom_call.1} parent=1 // loop_header
      %s16 = sphi 0, %s20
      %p17 = scmp.ge.s32.totalorder %s16, 4
      %s26 = sphi 0, %s28
      %s29 = sphi 0, %s26
      %s30 = sphi 0, %s29
      %s46 = sphi 0, %s30
      %s50 = sphi 0, %s50
      %s52 = sphi 0, %s50
      %s53 = sphi 0, %s52
      %s67 = sphi 0, %s53
      %s71 = sphi 0, %s71
      %s73 = sphi 0, %s71
      %s74 = sphi 0, %s73
      %s88 = sphi 0, %s74
      %s94 = sphi 0, %s96
      %s97 = sphi 0, %s94
      %s98 = sphi 0, %s97
      %s114 = sphi 0, %s98
    $region4: #{tpu_custom_call.1} parent=1 // loop_header_branch
      %19 = sbr.rel (%p17) target = $region8
    $region5: #{tpu_custom_call.1} parent=1 // loop_body
      %s21 = ssub.s32 %s16, 1
      %s22 = ssub.s32 %s16, 2
      %s23 = sadd.s32 %s16, 1
      %s24 = ssub.s32 %s16, %s23
      %p25 = scmp.eq.s32.totalorder %s24, 0
      %s27 = sadd.s32 %s26, 1
      %s28 = scalar_select %p25, %s26, %s27
      %p31 = pneg %p25
      %p32 = scmp.eq.s32.totalorder %s16, 1
      %p33 = por %p31, %p32
      %p34 = scmp.ne.s32.totalorder %s26, %s29
      %p35 = scmp.eq.s32.totalorder %s16, 0
      %p36 = por %p34, %p35
      %p37 = scmp.ne.s32.totalorder %s26, %s29
      %p38 = scmp.eq.s32.totalorder %s21, 1
      %p39 = por %p37, %p38
      %p40 = scmp.ne.s32.totalorder %s29, %s30
      %p41 = scmp.eq.s32.totalorder %s21, 0
      %p42 = por %p40, %p41
      %p43 = scmp.ne.s32.totalorder %s29, %s30
      %p44 = scmp.eq.s32.totalorder %s22, 1
      %p45 = por %p43, %p44
      %p47 = scmp.ne.s32.totalorder %s30, %s46
      %p48 = scmp.eq.s32.totalorder %s22, 0
      %p49 = por %p47, %p48
      %s51 = sadd.s32 %s50, 1
      %p54 = scmp.eq.s32.totalorder %s16, 1
      %p55 = scmp.ne.s32.totalorder %s50, %s52
      %p56 = scmp.eq.s32.totalorder %s16, 0
      %p57 = por %p55, %p56
      %p58 = scmp.ne.s32.totalorder %s50, %s52
      %p59 = scmp.eq.s32.totalorder %s21, 1
      %p60 = por %p58, %p59
      %p61 = scmp.ne.s32.totalorder %s52, %s53
      %p62 = scmp.eq.s32.totalorder %s21, 0
      %p63 = por %p61, %p62
      %p64 = scmp.ne.s32.totalorder %s52, %s53
      %p65 = scmp.eq.s32.totalorder %s22, 1
      %p66 = por %p64, %p65
      %p68 = scmp.ne.s32.totalorder %s53, %s67
      %p69 = scmp.eq.s32.totalorder %s22, 0
      %p70 = por %p68, %p69
      %s72 = sadd.s32 %s71, 1
      %p75 = scmp.eq.s32.totalorder %s16, 1
      %p76 = scmp.ne.s32.totalorder %s71, %s73
      %p77 = scmp.eq.s32.totalorder %s16, 0
      %p78 = por %p76, %p77
      %p79 = scmp.ne.s32.totalorder %s71, %s73
      %p80 = scmp.eq.s32.totalorder %s21, 1
      %p81 = por %p79, %p80
      %p82 = scmp.ne.s32.totalorder %s73, %s74
      %p83 = scmp.eq.s32.totalorder %s21, 0
      %p84 = por %p82, %p83
      %p85 = scmp.ne.s32.totalorder %s73, %s74
      %p86 = scmp.eq.s32.totalorder %s22, 1
      %p87 = por %p85, %p86
      %p89 = scmp.ne.s32.totalorder %s74, %s88
      %p90 = scmp.eq.s32.totalorder %s22, 0
      %p91 = por %p89, %p90
      %s92 = ssub.s32 %s16, %s23
      %p93 = scmp.eq.s32.totalorder %s92, 0
      %s95 = sadd.s32 %s94, 1
      %s96 = scalar_select %p93, %s94, %s95
      %p99 = pneg %p93
      %p100 = scmp.eq.s32.totalorder %s16, 1
      %p101 = por %p99, %p100
      %p102 = scmp.ne.s32.totalorder %s94, %s97
      %p103 = scmp.eq.s32.totalorder %s16, 0
      %p104 = por %p102, %p103
      %p105 = scmp.ne.s32.totalorder %s94, %s97
      %p106 = scmp.eq.s32.totalorder %s21, 1
      %p107 = por %p105, %p106
      %p108 = scmp.ne.s32.totalorder %s97, %s98
      %p109 = scmp.eq.s32.totalorder %s21, 0
      %p110 = por %p108, %p109
      %p111 = scmp.ne.s32.totalorder %s97, %s98
      %p112 = scmp.eq.s32.totalorder %s22, 1
      %p113 = por %p111, %p112
      %p115 = scmp.ne.s32.totalorder %s98, %s114
      %p116 = scmp.eq.s32.totalorder %s22, 0
      %p117 = por %p115, %p116
      %p118 = scmp.le.s32.totalorder 1, %s16
      %p119 = scmp.lt.s32.totalorder %s16, 3
      %p120 = pnand %p118, %p119
      %p121 = pneg %p120
      // Predicated region
      $region9: #{tpu_custom_call.1} parent=5 // pred_check
        _
      $region10: #{tpu_custom_call.1} parent=5 // pred_check_branch
        %123 = sbr.rel (%p120) target = $region12
      $region11: #{tpu_custom_call.1} parent=5 // pred_region
        %s124 = ssub.s32 %s16, 1
        // Predicated region
        $region13: #{tpu_custom_call.1} parent=11 // pred_check
          %p125 = pneg %p63
        $region14: #{tpu_custom_call.1} parent=11 // pred_check_branch
          %127 = sbr.rel (%p125) target = $region16
        $region15: #{tpu_custom_call.1} parent=11 // pred_region
          %s129 = ssub.s32 512, 512
          %130 = vsyncadd [#allocation6], %s129
          %s131 = sshll.u32 [#allocation5], 4
          %s132 = int_to_ptr.vmem [resolvable:$true] %s131
          %137 = dma.hbm_to_vmem [thread:$0]  %s1, 512, %s132, [#allocation6], 128, 128, 8
        $region16: #{tpu_custom_call.1} parent=11 // pred_fallthru
          _
        // Predicated region
        $region17: #{tpu_custom_call.1} parent=11 // pred_check
          %p138 = pneg %p84
        $region18: #{tpu_custom_call.1} parent=11 // pred_check_branch
          %140 = sbr.rel (%p138) target = $region20
        $region19: #{tpu_custom_call.1} parent=11 // pred_region
          _
        $region20: #{tpu_custom_call.1} parent=11 // pred_fallthru
          _
      $region12: #{tpu_custom_call.1} parent=5 // pred_fallthru
        _
      %p141 = scmp.lt.s32.totalorder %s16, 2
      // Predicated region
      $region21: #{tpu_custom_call.1} parent=5 // pred_check
        %p142 = pneg %p141
      $region22: #{tpu_custom_call.1} parent=5 // pred_check_branch
        %144 = sbr.rel (%p142) target = $region24
      $region23: #{tpu_custom_call.1} parent=5 // pred_region
        // Predicated region
        $region25: #{tpu_custom_call.1} parent=23 // pred_check
          %p145 = pneg %p36
        $region26: #{tpu_custom_call.1} parent=23 // pred_check_branch
          %147 = sbr.rel (%p145) target = $region28
        $region27: #{tpu_custom_call.1} parent=23 // pred_region
          %s148 = sand.u32 %s26, 1
          %s149 = scalar_lea.sflag [#allocation3], %s148
          %s150 = sand.u32 %s26, 1
          %s151 = smul.addr %s150, 8
          %s152 = scalar_lea.vmem [#allocation2], %s151
          %s154 = ssub.s32 128, 128
          %155 = vsyncadd %s149, %s154
          %s156 = smul.addr %s16, 128
          %s157 = scalar_lea.hbm %s0, %s156
          %s159 = sshll.u32 %s152, 4
          %s160 = int_to_ptr.vmem [resolvable:$true] %s159
          %162 = dma.hbm_to_vmem [thread:$0]  %s157, 128, %s160, %s149
        $region28: #{tpu_custom_call.1} parent=23 // pred_fallthru
          _
      $region24: #{tpu_custom_call.1} parent=5 // pred_fallthru
        _
      %p163 = scmp.le.s32.totalorder 1, %s16
      %p164 = scmp.lt.s32.totalorder %s16, 3
      %p165 = pnand %p163, %p164
      %p166 = pneg %p165
      // Predicated region
      $region29: #{tpu_custom_call.1} parent=5 // pred_check
        _
      $region30: #{tpu_custom_call.1} parent=5 // pred_check_branch
        %168 = sbr.rel (%p165) target = $region32
      $region31: #{tpu_custom_call.1} parent=5 // pred_region
        %s169 = ssub.s32 %s16, 1
        %s170 = sand.u32 %s29, 1
        %s171 = scalar_lea.sflag [#allocation3], %s170
        %s172 = sand.u32 %s29, 1
        %s173 = smul.addr %s172, 8
        %s174 = scalar_lea.vmem [#allocation2], %s173
        // Predicated region
        $region33: #{tpu_custom_call.1} parent=31 // pred_check
          %p175 = pneg %p42
        $region34: #{tpu_custom_call.1} parent=31 // pred_check_branch
          %177 = sbr.rel (%p175) target = $region36
        $region35: #{tpu_custom_call.1} parent=31 // pred_region
          %178 = dma.done %s171, 128
        $region36: #{tpu_custom_call.1} parent=31 // pred_fallthru
          _
        // Predicated region
        $region37: #{tpu_custom_call.1} parent=31 // pred_check
          %p179 = pneg %p63
        $region38: #{tpu_custom_call.1} parent=31 // pred_check_branch
          %181 = sbr.rel (%p179) target = $region40
        $region39: #{tpu_custom_call.1} parent=31 // pred_region
          %182 = dma.done [#allocation6], 512
        $region40: #{tpu_custom_call.1} parent=31 // pred_fallthru
          _
        %s183 = sand.u32 %s29, 1
        %s184 = scalar_lea.sflag [#allocation3], %s183
        %s185 = sand.u32 %s29, 1
        %s186 = smul.addr %s185, 8
        %s187 = scalar_lea.vmem [#allocation2], %s186
        %p188 = pneg %p42
        %p189 = pneg %p39
        %p190 = pneg %p63
        %p191 = pneg %p60
        %p192 = pneg %p84
        %p193 = pneg %p81
        %p194 = pneg %p110
        %p195 = pneg %p107
        %s196 = sand.u32 %s97, 1
        %s197 = scalar_lea.sflag [#allocation4], %s196
        %s198 = sand.u32 %s97, 1
        %s199 = smul.addr %s198, 8
        %s200 = scalar_lea.vmem [#allocation7], %s199
        %v201 = vld [vmem:[%s174] sm:$0xff]
        %vm202 = vcmask 261120
        %v203 = vsel %vm202, %v201, 0.0
        %204 = vadd.xlane.f32.xlu0 %v203
        %v205 = vpop.xlane.xlu0 %204
        %v206 = vmul.f32 %v201, %v201
        %v207 = vsel %vm202, %v206, 0.0
        %208 = vadd.xlane.f32.xlu0 %v207
        %v209 = vpop.xlane.xlu0 %208
        %v210 = vmul.f32 %v205, 0.03125
        %v211 = vmul.f32 %v209, 0.03125
        %v212 = vmul.f32 %v210, %v210
        %v213 = vsub.f32 %v211, %v212
        %v214 = vmax.f32 %v213, 0.0
        %v215 = vsub.f32 %v201, %v210
        %v216 = vadd.f32 %v214, 1e-05
        %v217 = vrsqrt.pop %v216
        %v218 = vmul.f32 %v215, %v217
        %v219 = vld [vmem:[#allocation5] sm:$0xff]
        %v220 = vld [vmem:[#allocation5 + $0x8] sm:$0xff]
        %v221 = vld [vmem:[#allocation5 + $0x10] sm:$0xff]
        %v222 = vld [vmem:[#allocation5 + $0x18] sm:$0xff]
        %v223 = vld [vmem:[%s2] sm:$0x1]
        %v225 = vlaneseq
        %v226 = vshrl.u32 %v225, 7
        %v227 = vsub.s32 0, %v226
        %v228 = vrot.slane %v223, %v227
        %v231 = vsel %vm202, %v218, 0
        %233 = vmatprep.subr.mxu0 0.0
        %234 = vmatpush1.msra.mxu0 %v219
        %235 = vmatprep.subr.mxu0 0.0
        %236 = vmatpush1.msra.mxu0 %v220
        %237 = vmatprep.subr.mxu0 0.0
        %238 = vmatpush1.msra.mxu0 %v221
        %239 = vmatprep.subr.mxu0 0.0
        %240 = vmatpush1.msra.mxu0 %v222
        %241 = vmatprep.subr.mxu0 0.0
        %242 = vmatpush1.msra.mxu0 0.0
        %243 = vmatprep.subr.mxu0 0.0
        %244 = vmatpush1.msra.mxu0 0.0
        %245 = vmatprep.subr.mxu0 0.0
        %246 = vmatpush1.msra.mxu0 0.0
        %247 = vmatprep.subr.mxu0 0.0
        %248 = vmatpush1.msra.mxu0 0.0
        %249 = vmatprep.subr.mxu0 0.0
        %250 = vmatpush1.msra.mxu0 0.0
        %251 = vmatprep.subr.mxu0 0.0
        %252 = vmatpush1.msra.mxu0 0.0
        %253 = vmatprep.subr.mxu0 0.0
        %254 = vmatpush1.msra.mxu0 0.0
        %255 = vmatprep.subr.mxu0 0.0
        %256 = vmatpush1.msra.mxu0 0.0
        %257 = vmatprep.subr.mxu0 0.0
        %258 = vmatpush1.msra.mxu0 0.0
        %259 = vmatprep.subr.mxu0 0.0
        %260 = vmatpush1.msra.mxu0 0.0
        %261 = vmatprep.subr.mxu0 0.0
        %262 = vmatpush1.msra.mxu0 0.0
        %263 = vmatprep.subr.mxu0 0.0
        %264 = vmatpush1.msra.mxu0 0.0
        %265 = vmatprep.subr.mxu0 0.0
        %266 = vmatpush1.msra.mxu0 0.0
        %267 = vmatprep.subr.mxu0 0.0
        %268 = vmatpush1.msra.mxu0 0.0
        %269 = vmatprep.subr.mxu0 0.0
        %270 = vmatpush1.msra.mxu0 0.0
        %271 = vmatprep.subr.mxu0 0.0
        %272 = vmatpush1.msra.mxu0 0.0
        %273 = vmatprep.subr.mxu0 0.0
        %274 = vmatpush1.msra.mxu0 0.0
        %275 = vmatprep.subr.mxu0 0.0
        %276 = vmatpush1.msra.mxu0 0.0
        %277 = vmatprep.subr.mxu0 0.0
        %278 = vmatpush1.msra.mxu0 0.0
        %279 = vmatprep.subr.mxu0 0.0
        %280 = vmatpush1.msra.mxu0 0.0
        %281 = vmatprep.subr.mxu0 0.0
        %282 = vmatpush1.msra.mxu0 0.0
        %283 = vmatprep.subr.mxu0 0.0
        %284 = vmatpush1.msra.mxu0 0.0
        %285 = vmatprep.subr.mxu0 0.0
        %286 = vmatpush1.msra.mxu0 0.0
        %287 = vmatprep.subr.mxu0 0.0
        %288 = vmatpush1.msra.mxu0 0.0
        %289 = vmatprep.subr.mxu0 0.0
        %290 = vmatpush1.msra.mxu0 0.0
        %291 = vmatprep.subr.mxu0 0.0
        %292 = vmatpush1.msra.mxu0 0.0
        %293 = vmatprep.subr.mxu0 0.0
        %294 = vmatpush1.msra.mxu0 0.0
        %295 = vmatprep.subr.mxu0 0.0
        %296 = vmatpush1.msra.mxu0 0.0
        %297 = vmatprep.mubr.f32.mxu0 0.0
        %298 = vmatmul.mubr.f32.gmra.mrb[0].mxu0 %v231
        %v299 = vpop.f32.mrb[0].mxu0
        %v300 = vadd.f32 %v228, %v299
        %v301 = vpop.f32.mrb[0].mxu0
        %302 = vdwg.mxu0
        %303 = vst.msk [vmem:[%s200] sm:$0xff] %vm202, %v300
        %s304 = sand.u32 %s97, 1
        %s305 = scalar_lea.sflag [#allocation4], %s304
        %s306 = sand.u32 %s97, 1
        %s307 = smul.addr %s306, 8
        %s308 = scalar_lea.vmem [#allocation7], %s307
        // Predicated region
        $region41: #{tpu_custom_call.1} parent=31 // pred_check
          %p309 = pneg %p107
        $region42: #{tpu_custom_call.1} parent=31 // pred_check_branch
          %311 = sbr.rel (%p309) target = $region44
        $region43: #{tpu_custom_call.1} parent=31 // pred_region
          %s313 = ssub.s32 128, 128
          %314 = vsyncadd %s305, %s313
          %s315 = smul.addr %s21, 128
          %s316 = scalar_lea.hbm %s3, %s315
          %s318 = sshll.u32 %s308, 4
          %s319 = int_to_ptr.vmem [resolvable:$true] %s318
          %321 = dma.vmem_to_hbm [thread:$0]  %s319, 128, %s316, %s305
        $region44: #{tpu_custom_call.1} parent=31 // pred_fallthru
          _
      $region32: #{tpu_custom_call.1} parent=5 // pred_fallthru
        _
      %p322 = scmp.le.s32.totalorder 2, %s16
      // Predicated region
      $region45: #{tpu_custom_call.1} parent=5 // pred_check
        %p323 = pneg %p322
      $region46: #{tpu_custom_call.1} parent=5 // pred_check_branch
        %325 = sbr.rel (%p323) target = $region48
      $region47: #{tpu_custom_call.1} parent=5 // pred_region
        %s326 = ssub.s32 %s16, 2
        // Predicated region
        $region49: #{tpu_custom_call.1} parent=47 // pred_check
          %p327 = pneg %p113
        $region50: #{tpu_custom_call.1} parent=47 // pred_check_branch
          %329 = sbr.rel (%p327) target = $region52
        $region51: #{tpu_custom_call.1} parent=47 // pred_region
          %s330 = sand.u32 %s98, 1
          %s331 = scalar_lea.sflag [#allocation4], %s330
          %s332 = sand.u32 %s98, 1
          %s333 = smul.addr %s332, 8
          %s334 = scalar_lea.vmem [#allocation7], %s333
          %335 = dma.done %s331, 128
        $region52: #{tpu_custom_call.1} parent=47 // pred_fallthru
          _
      $region48: #{tpu_custom_call.1} parent=5 // pred_fallthru
        _
    $region6: #{tpu_custom_call.1} parent=1 // loop_footer
      %s20 = sadd.s32 1, %s16
    $region7: #{tpu_custom_call.1} parent=1 // loop_footer_branch
      %15 = sbr.rel target = $region3
    $region8: #{tpu_custom_call.1} parent=1 // loop_exit
      _
    %336 = vsyncpa [#allocation3], 1
    %s337 = scalar_lea.sflag [#allocation3], 1
    %338 = vsyncpa %s337, 1
    %339 = vsyncpa [#allocation6], 1
    %340 = vsyncpa [#allocation4], 1
    %s341 = scalar_lea.sflag [#allocation4], 1
    %342 = vsyncpa %s341, 1

</llo_original>
